<compile_context>
chip_gen: v7x
topology: tpu7x:2x2x1
jax: 0.10.0
libtpu: 0.0.40
codegen_flags: <defaults>
</compile_context>

<pallas_src>
import functools

import jax
import jax.numpy as jnp
from jax import lax
from jax.experimental import pallas as pl
from jax.experimental.pallas import tpu as pltpu


def _round_up(x: int, m: int) -> int:
    return -(-x // m) * m


def _vmem_budget_bytes() -> int:
    """Generation-aware scoped-VMEM budget (~3/4 of physical, capped)."""
    try:
        cap = int(pltpu.get_tpu_info().vmem_capacity_bytes)
    except Exception:               # interpret mode / CPU / older runtimes
        cap = 64 * 1024 * 1024      # v7x-sized conservative default
    return min((cap * 3) // 4, 96 * 1024 * 1024)


def _est_vmem_bytes(tb: int, tr: int, tk: int, n: int) -> int:
    """Rough peak-VMEM model for one grid step (padded to (8,128) tiles)."""
    lanes = _round_up(n, 128)
    out_blk = tb * _round_up(tr, 8) * lanes * 4        # output tile
    s_lane = tb * 8 * lanes * 4                        # (tb,1,n) block
    s_col = tb * _round_up(n, 8) * 128 * 4             # (tb,n,1): 128-lane pad
    rowsum = tb * 8 * lanes * 4                        # scratch
    temps = tb * _round_up(tr, 8) * lanes * 4          # logits temp
    temps += tb * _round_up(tk, 8) * lanes * 4         # |diff| chunk temp
    return 2 * out_blk + 2 * s_lane + 2 * s_col + rowsum + temps


def _choose_tiles(b: int, n: int, budget: int, block_rows=None, block_k=None):
    # Rowsum chunk size: decoupled from TR, capped at 128 sublanes.
    tk = int(block_k) if block_k is not None else min(128, n)

    # Row tile: full N up to 1024 (single tile, rowsum never recomputed),
    # otherwise ~512 preferring a divisor of N (avoids the masked tail).
    if block_rows is not None:
        tr = int(block_rows)
    else:
        if n <= 1024:
            tr = n
        else:
            tr = 512
            for t in range(512, 255, -8):
                if n % t == 0:
                    tr = t
                    break
        while tr > 8 and _est_vmem_bytes(1, tr, tk, n) > budget:
            tr = max(8, ((tr // 2) // 8) * 8)

    # Batch packing: amortize the rowsum pass + per-step overhead for small
    # and moderate N, subject to the VMEM budget and tb | b.
    tb = 1
    if n <= 1024:
        cap = min(b, 64, max(1, 4096 // max(n, 1)))
        for cand in range(cap, 1, -1):
            if b % cand == 0 and _est_vmem_bytes(cand, tr, tk, n) <= budget:
                tb = cand
                break
    return tb, tr, tk


def _neuralsort_kernel(s_lane_ref, s_col_ref, out_ref, rowsum_ref, *,
                       tau: float, n: int, tr: int, tk: int):
    """One (TB, TR, N) output tile.

    s_lane_ref : (TB, 1, N)  scores, N on lanes.
    s_col_ref  : (TB, N, 1)  scores, N on sublanes.
    out_ref    : (TB, TR, N) relaxed permutation rows for this row tile.
    rowsum_ref : (TB, 1, N)  VMEM scratch: sum_k |s_c - s_k| / tau per batch blk.
    """
    inv_tau = 1.0 / tau
    j = pl.program_id(1)                      # row-tile index (innermost axis)
    s_row = s_lane_ref[...]                   # (TB, 1, N)

    n_full = n // tk
    rem = n - n_full * tk

    # ---- once per batch block: cache rowsum / tau ---------------------------
    @pl.when(j == 0)
    def _():
        rowsum_ref[...] = jnp.zeros_like(rowsum_ref)

        def add_chunk(off, size):
            s_k = s_col_ref[:, pl.ds(off, size), :]           # (TB, size, 1)
            a = jnp.abs(s_k - s_row)                          # (TB, size, N)
            rowsum_ref[...] += jnp.sum(a, axis=1, keepdims=True)

        if n_full > 0:
            if n_full <= 8:
                # Statically unrolled short loop (LLO-visible).
                for c in range(n_full):
                    add_chunk(c * tk, tk)
            else:
                @pl.loop(0, n_full)
                def _(c):
                    add_chunk(pl.multiple_of(c * tk, tk), tk)
        if rem > 0:
            add_chunk(n_full * tk, rem)       # static tail chunk, no OOB read

        rowsum_ref[...] *= inv_tau

    # ---- per row tile: logits + softmax over lanes ---------------------------
    r = lax.broadcasted_iota(jnp.int32, (1, tr, 1), 1) + j * tr       # (1,TR,1)
    scal = ((n - 1) - 2 * r).astype(jnp.float32) * inv_tau            # (1,TR,1)

    # logits[b, r, c] = (scaling[r] * s[b, c] - rowsum[b, c]) / tau
    logits = scal * s_row - rowsum_ref[...]                           # (TB,TR,N)

    m = jnp.max(logits, axis=-1, keepdims=True)
    out_ref[...] = jnp.exp(logits - m)                # exp written in place
    denom = jnp.sum(out_ref[...], axis=-1, keepdims=True)
    inv = pl.reciprocal(denom, approx=True)           # EUP fast path
    inv = inv * (2.0 - denom * inv)                   # one Newton step -> exact
    out_ref[...] = out_ref[...] * inv


def neural_sort(scores: jax.Array, tau: float = 1.0, hard: bool = False, *,
                block_rows=None, block_k=None) -> jax.Array:
    """JAX/Pallas equivalent of NeuralSort.forward.

    scores: (B, N, 1) array (cast to float32 like torch).  Returns (B, N, N) f32.
    block_rows / block_k: optional tile-size overrides (testing / tuning).
    """
    assert scores.ndim == 3 and scores.shape[-1] == 1, "expected (B, N, 1) scores"
    b, n, _ = scores.shape
    s_col = scores.astype(jnp.float32)           # (B, N, 1): N on sublanes
    s_lane = s_col.reshape(b, 1, n)              # (B, 1, N): N on lanes

    budget = _vmem_budget_bytes()
    tb, tr, tk = _choose_tiles(b, n, budget, block_rows, block_k)
    grid = (b // tb, pl.cdiv(n, tr))

    kernel = functools.partial(_neuralsort_kernel, tau=float(tau), n=n, tr=tr, tk=tk)

    cost = pl.CostEstimate(
        flops=9 * b * n * n,                    # rowsum + logits + softmax
        transcendentals=b * n * n,              # exp
        bytes_accessed=4 * b * n * n + 8 * b * n,
    )

    p_hat = pl.pallas_call(
        kernel,
        out_shape=jax.ShapeDtypeStruct((b, n, n), jnp.float32),
        grid_spec=pltpu.PrefetchScalarGridSpec(
            num_scalar_prefetch=0,
            grid=grid,
            in_specs=[
                pl.BlockSpec((tb, 1, n), lambda i, j: (i, 0, 0)),
                pl.BlockSpec((tb, n, 1), lambda i, j: (i, 0, 0)),
            ],
            out_specs=pl.BlockSpec((tb, tr, n), lambda i, j: (i, j, 0)),
            scratch_shapes=[pltpu.VMEM((tb, 1, n), jnp.float32)],
        ),
        compiler_params=pltpu.CompilerParams(
            dimension_semantics=("parallel", "arbitrary"),
            vmem_limit_bytes=int(budget),
        ),
        cost_estimate=cost,
    )(s_lane, s_col)

    if hard:
        # Straight-through: forward value is the hard one-hot permutation
        # (wrapper-level glue; argmax first-index tie-breaking like torch).
        p = jax.nn.one_hot(jnp.argmax(p_hat, axis=-1), n, dtype=p_hat.dtype)
        p_hat = lax.stop_gradient(p - p_hat) + p_hat
    return p_hat


def _neural_sort_ref(scores, tau=1.0):
    """Pure-JAX reference mirroring the PyTorch module (for validation)."""
    scores = scores.astype(jnp.float32)
    _, n, _ = scores.shape
    a_scores = jnp.abs(scores - jnp.transpose(scores, (0, 2, 1)))
    # B = A_scores @ (one @ one.T): every column of B is the row-sum of A_scores.
    bmat = jnp.sum(a_scores, axis=-1, keepdims=True)
    scaling = (n + 1 - 2 * (jnp.arange(n) + 1)).astype(jnp.float32)
    c = scores * scaling[None, None, :]
    p_max = jnp.transpose(c - bmat, (0, 2, 1))
    return jax.nn.softmax(p_max / tau, axis=-1)


if __name__ == "__main__":
    def _check(scores, tau, atol=1e-4, rtol=1e-3, **kw):
        out = jax.block_until_ready(neural_sort(scores, tau=tau, **kw))
        ref = _neural_sort_ref(scores, tau=tau)
        assert out.shape == ref.shape and out.dtype == jnp.float32
        assert jnp.allclose(jnp.sum(out, axis=-1), 1.0, atol=1e-4), \
            f"rows not normalized for shape {scores.shape}"
        assert jnp.allclose(out, ref, atol=atol, rtol=rtol), \
            f"mismatch vs reference for shape {scores.shape}"
        return out

    key = jax.random.PRNGKey(0)

    # 1) Small shape typical of the module (single grid step, TB = B).
    s_small = jax.random.normal(key, (2, 8, 1), dtype=jnp.float32)
    _check(s_small, 1.0)

    # Hard (straight-through) path: forward value is a hard permutation matrix.
    out_hard = jax.block_until_ready(neural_sort(s_small, tau=1.0, hard=True))
    assert jnp.allclose(jnp.sum(out_hard, axis=-1), 1.0, atol=1e-5)
    assert jnp.allclose(jnp.max(out_hard, axis=-1), 1.0, atol=1e-5)

    # 2) Moderate N: TB > 1 packing + chunked (TK = 128) rowsum, single row
    #    tile.  Looser tolerance: logits are O(N/tau), so f32 summation-order
    #    differences vs. the reference reach ~1e-3 absolute in the softmax.
    s_med = jax.random.normal(jax.random.PRNGKey(0), (2, 512, 1), dtype=jnp.float32)
    _check(s_med, 0.7, atol=2e-3, rtol=2e-3)

    # 3) Forced row tiling: multiple row tiles reuse the cached rowsum,
    #    unrolled rowsum chunks (grid = (1, 4), TK = 16).
    s_tiled = jax.random.normal(jax.random.PRNGKey(0), (2, 64, 1), dtype=jnp.float32)
    _check(s_tiled, 1.3, block_rows=16, block_k=16)

    # 4) Ragged N: masked final row tile (cdiv grid) + static remainder chunk.
    s_rag = jax.random.normal(jax.random.PRNGKey(0), (2, 20, 1), dtype=jnp.float32)
    _check(s_rag, 0.9, block_rows=16, block_k=16)

    print("KERNEL_OK")
</pallas_src>

<mosaic_0001>
module attributes {stable_mosaic.version = 11 : i64} {
  func.func @_neuralsort_kernel(%arg0: i32, %arg1: i32, %arg2: memref<2x1x8xf32, #tpu.memory_space<vmem>>, %arg3: memref<2x8x1xf32, #tpu.memory_space<vmem>>, %arg4: memref<2x8x8xf32, #tpu.memory_space<vmem>>, %arg5: memref<2x1x8xf32, #tpu.memory_space<vmem>>) attributes {dimension_semantics = [#tpu.dimension_semantics<parallel>, #tpu.dimension_semantics<arbitrary>], iteration_bounds = array<i64: 1, 1>, scalar_prefetch = 0 : i64, scratch_operands = 1 : i64, tpu.core_type = #tpu.core_type<tc>, window_params = [{transform_indices = @transform_0, window_bounds = array<i64: 2, 1, 8>}, {transform_indices = @transform_1, window_bounds = array<i64: 2, 8, 1>}, {transform_indices = @transform_2, window_bounds = array<i64: 2, 8, 8>}]} {
    %c0 = arith.constant 0 : index
    %c0_0 = arith.constant 0 : index
    %c0_1 = arith.constant 0 : index
    %0 = vector.load %arg2[%c0, %c0_0, %c0_1] : memref<2x1x8xf32, #tpu.memory_space<vmem>>, vector<2x1x8xf32>
    %c0_i32 = arith.constant 0 : i32
    %1 = arith.cmpi eq, %arg1, %c0_i32 : i32
    %2 = arith.extui %1 : i1 to i32
    %c0_i32_2 = arith.constant 0 : i32
    %3 = arith.cmpi ne, %2, %c0_i32_2 : i32
    scf.if %3 {
      %cst_21 = arith.constant 0.000000e+00 : f32
      %39 = vector.broadcast %cst_21 : f32 to vector<2x1x8xf32>
      %c0_22 = arith.constant 0 : index
      %c0_23 = arith.constant 0 : index
      %c0_24 = arith.constant 0 : index
      %40 = vector.load %arg5[%c0_22, %c0_23, %c0_24] : memref<2x1x8xf32, #tpu.memory_space<vmem>>, vector<2x1x8xf32>
      tpu.vector_store %arg5[%c0_22, %c0_23, %c0_24], %39 {strides = array<i32>} : memref<2x1x8xf32, #tpu.memory_space<vmem>>, vector<2x1x8xf32>,
      %c0_25 = arith.constant 0 : index
      %c0_26 = arith.constant 0 : index
      %c0_27 = arith.constant 0 : index
      %41 = vector.load %arg3[%c0_25, %c0_26, %c0_27] : memref<2x8x1xf32, #tpu.memory_space<vmem>>, vector<2x8x1xf32>
      %42 = vector.broadcast %41 : vector<2x8x1xf32> to vector<2x8x8xf32>
      %43 = vector.broadcast %0 : vector<2x1x8xf32> to vector<2x8x8xf32>
      %44 = arith.subf %42, %43 : vector<2x8x8xf32>
      %45 = math.absf %44 : vector<2x8x8xf32>
      %c0_28 = arith.constant 0 : index
      %c0_29 = arith.constant 0 : index
      %c0_30 = arith.constant 0 : index
      %46 = vector.load %arg5[%c0_28, %c0_29, %c0_30] : memref<2x1x8xf32, #tpu.memory_space<vmem>>, vector<2x1x8xf32>
      %cst_31 = arith.constant dense<0.000000e+00> : vector<2x8xf32>
      %47 = vector.multi_reduction <add>, %45, %cst_31 [1] : vector<2x8x8xf32> to vector<2x8xf32>
      %48 = vector.shape_cast %47 : vector<2x8xf32> to vector<2x1x8xf32>
      %49 = arith.addf %46, %48 : vector<2x1x8xf32>
      %c0_32 = arith.constant 0 : index
      %c0_33 = arith.constant 0 : index
      %c0_34 = arith.constant 0 : index
      %50 = vector.load %arg5[%c0_32, %c0_33, %c0_34] : memref<2x1x8xf32, #tpu.memory_space<vmem>>, vector<2x1x8xf32>
      tpu.vector_store %arg5[%c0_32, %c0_33, %c0_34], %49 {strides = array<i32>} : memref<2x1x8xf32, #tpu.memory_space<vmem>>, vector<2x1x8xf32>,
      %c0_35 = arith.constant 0 : index
      %c0_36 = arith.constant 0 : index
      %c0_37 = arith.constant 0 : index
      %51 = vector.load %arg5[%c0_35, %c0_36, %c0_37] : memref<2x1x8xf32, #tpu.memory_space<vmem>>, vector<2x1x8xf32>
      %cst_38 = arith.constant 1.000000e+00 : f32
      %52 = vector.broadcast %cst_38 : f32 to vector<2x1x8xf32>
      %53 = arith.mulf %51, %52 : vector<2x1x8xf32>
      %c0_39 = arith.constant 0 : index
      %c0_40 = arith.constant 0 : index
      %c0_41 = arith.constant 0 : index
      %54 = vector.load %arg5[%c0_39, %c0_40, %c0_41] : memref<2x1x8xf32, #tpu.memory_space<vmem>>, vector<2x1x8xf32>
      tpu.vector_store %arg5[%c0_39, %c0_40, %c0_41], %53 {strides = array<i32>} : memref<2x1x8xf32, #tpu.memory_space<vmem>>, vector<2x1x8xf32>,
    } else {
    }
    %4 = tpu.iota {dimensions = array<i32: 1>} : vector<1x8x1xi32>
    %c8_i32 = arith.constant 8 : i32
    %5 = arith.muli %arg1, %c8_i32 : i32
    %6 = vector.broadcast %5 : i32 to vector<1x8x1xi32>
    %7 = arith.addi %4, %6 : vector<1x8x1xi32>
    %c2_i32 = arith.constant 2 : i32
    %8 = vector.broadcast %c2_i32 : i32 to vector<1x8x1xi32>
    %9 = arith.muli %8, %7 : vector<1x8x1xi32>
    %c7_i32 = arith.constant 7 : i32
    %10 = vector.broadcast %c7_i32 : i32 to vector<1x8x1xi32>
    %11 = arith.subi %10, %9 : vector<1x8x1xi32>
    %12 = arith.sitofp %11 : vector<1x8x1xi32> to vector<1x8x1xf32>
    %cst = arith.constant 1.000000e+00 : f32
    %13 = vector.broadcast %cst : f32 to vector<1x8x1xf32>
    %14 = arith.mulf %12, %13 : vector<1x8x1xf32>
    %15 = vector.broadcast %14 : vector<1x8x1xf32> to vector<2x8x8xf32>
    %16 = vector.broadcast %0 : vector<2x1x8xf32> to vector<2x8x8xf32>
    %17 = arith.mulf %15, %16 : vector<2x8x8xf32>
    %c0_3 = arith.constant 0 : index
    %c0_4 = arith.constant 0 : index
    %c0_5 = arith.constant 0 : index
    %18 = vector.load %arg5[%c0_3, %c0_4, %c0_5] : memref<2x1x8xf32, #tpu.memory_space<vmem>>, vector<2x1x8xf32>
    %19 = vector.broadcast %18 : vector<2x1x8xf32> to vector<2x8x8xf32>
    %20 = arith.subf %17, %19 : vector<2x8x8xf32>
    %cst_6 = arith.constant dense<0xFF800000> : vector<2x8xf32>
    %21 = vector.multi_reduction <maximumf>, %20, %cst_6 [2] : vector<2x8x8xf32> to vector<2x8xf32>
    %22 = vector.shape_cast %21 : vector<2x8xf32> to vector<2x8x1xf32>
    %23 = vector.broadcast %22 : vector<2x8x1xf32> to vector<2x8x8xf32>
    %24 = arith.subf %20, %23 : vector<2x8x8xf32>
    %25 = math.exp %24 : vector<2x8x8xf32>
    %c0_7 = arith.constant 0 : index
    %c0_8 = arith.constant 0 : index
    %c0_9 = arith.constant 0 : index
    %26 = vector.load %arg4[%c0_7, %c0_8, %c0_9] : memref<2x8x8xf32, #tpu.memory_space<vmem>>, vector<2x8x8xf32>
    tpu.vector_store %arg4[%c0_7, %c0_8, %c0_9], %25 {strides = array<i32>} : memref<2x8x8xf32, #tpu.memory_space<vmem>>, vector<2x8x8xf32>,
    %c0_10 = arith.constant 0 : index
    %c0_11 = arith.constant 0 : index
    %c0_12 = arith.constant 0 : index
    %27 = vector.load %arg4[%c0_10, %c0_11, %c0_12] : memref<2x8x8xf32, #tpu.memory_space<vmem>>, vector<2x8x8xf32>
    %cst_13 = arith.constant dense<0.000000e+00> : vector<2x8xf32>
    %28 = vector.multi_reduction <add>, %27, %cst_13 [2] : vector<2x8x8xf32> to vector<2x8xf32>
    %29 = vector.shape_cast %28 : vector<2x8xf32> to vector<2x8x1xf32>
    %30 = tpu.reciprocal %29 {approx = true} : vector<2x8x1xf32> -> vector<2x8x1xf32>
    %31 = arith.mulf %29, %30 : vector<2x8x1xf32>
    %cst_14 = arith.constant 2.000000e+00 : f32
    %32 = vector.broadcast %cst_14 : f32 to vector<2x8x1xf32>
    %33 = arith.subf %32, %31 : vector<2x8x1xf32>
    %34 = arith.mulf %30, %33 : vector<2x8x1xf32>
    %c0_15 = arith.constant 0 : index
    %c0_16 = arith.constant 0 : index
    %c0_17 = arith.constant 0 : index
    %35 = vector.load %arg4[%c0_15, %c0_16, %c0_17] : memref<2x8x8xf32, #tpu.memory_space<vmem>>, vector<2x8x8xf32>
    %36 = vector.broadcast %34 : vector<2x8x1xf32> to vector<2x8x8xf32>
    %37 = arith.mulf %35, %36 : vector<2x8x8xf32>
    %c0_18 = arith.constant 0 : index
    %c0_19 = arith.constant 0 : index
    %c0_20 = arith.constant 0 : index
    %38 = vector.load %arg4[%c0_18, %c0_19, %c0_20] : memref<2x8x8xf32, #tpu.memory_space<vmem>>, vector<2x8x8xf32>
    tpu.vector_store %arg4[%c0_18, %c0_19, %c0_20], %37 {strides = array<i32>} : memref<2x8x8xf32, #tpu.memory_space<vmem>>, vector<2x8x8xf32>,
    return
  }
  func.func @transform_0(%arg0: i32, %arg1: i32) -> (i32, i32, i32) {
    %c0_i32 = arith.constant 0 : i32
    %c0_i32_0 = arith.constant 0 : i32
    %c0_i32_1 = arith.constant 0 : i32
    return %arg0, %c0_i32, %c0_i32_0 : i32, i32, i32
  }
  func.func @transform_1(%arg0: i32, %arg1: i32) -> (i32, i32, i32) {
    %c0_i32 = arith.constant 0 : i32
    %c0_i32_0 = arith.constant 0 : i32
    %c0_i32_1 = arith.constant 0 : i32
    return %arg0, %c0_i32, %c0_i32_0 : i32, i32, i32
  }
  func.func @transform_2(%arg0: i32, %arg1: i32) -> (i32, i32, i32) {
    %c0_i32 = arith.constant 0 : i32
    %c0_i32_0 = arith.constant 0 : i32
    return %arg0, %arg1, %c0_i32 : i32, i32, i32
  }
}

</mosaic_0001>

<llo_original>
// kernel: tpu_custom_call.1
$region0: #{tpu_custom_call.1}
  #allocation0 [shape = 'u32[]', space=smem, size = 0x4, offset = 0x4, fixed_abs, tag = 'smem constant byte address 0x4 - core index']
  #allocation1 [shape = 'u32[144,128]{1,0:T(1,128)}', space=vmem, size = 0x12000, scoped, tag = 'internal scratch']
  #allocation2 [shape = 'f32[2,1,8]{2,1,0:T(1,128)}', space=vmem, size = 0x400, scoped, tag = 'scratch operand']
  %s0 = inlined_call_operand.vmem [shape: f32[2,1,8], index: 0, kind: input, shape index: {}]
  %s1 = inlined_call_operand.vmem [shape: f32[2,8,1], index: 1, kind: input, shape index: {}]
  %s2 = inlined_call_operand.hbm [shape: f32[2,8,8], index: 2, kind: output, shape index: {}]
  %s3 = sld [smem:[#allocation0]]
  $region22: #{tpu_custom_call.1} parent=0
    _
  %s5 = ssub.s32 1, %s3
  %s6 = scalar_select 0, %s5, %s3
  $region1: #{tpu_custom_call.1} parent=0
    #allocation3 [shape = 'u8[8192]{0}', space=vmem, size = 0x2000, scoped, tag = 'output window, operand 0, single buffered']
    #allocation4 [shape = 's32[1]{0}', space=sflag, size = 0x4, scoped, tag = 'scoped memory for tpu_custom_call.1']
    %7 = vsyncpa [#allocation4], 0
    // Predicated region
    $region2: #{tpu_custom_call.1} parent=1 // pred_check
      _
    $region3: #{tpu_custom_call.1} parent=1 // pred_check_branch
      %9 = sbr.rel (0) target = $region5
    $region4: #{tpu_custom_call.1} parent=1 // pred_region
      _
    $region5: #{tpu_custom_call.1} parent=1 // pred_fallthru
      _
    // Predicated region
    $region6: #{tpu_custom_call.1} parent=1 // pred_check
      _
    $region7: #{tpu_custom_call.1} parent=1 // pred_check_branch
      %11 = sbr.rel (0) target = $region9
    $region8: #{tpu_custom_call.1} parent=1 // pred_region
      _
    $region9: #{tpu_custom_call.1} parent=1 // pred_fallthru
      _
    %v12 = vld [vmem:[%s0] sm:$0x1]
    %v13 = vld [vmem:[%s0 + $0x1] sm:$0x1]
    %p14 = scmp.eq.s32.totalorder 0, 0
    // Predicated region
    $region10: #{tpu_custom_call.1} parent=1 // pred_check
      %p15 = pneg %p14
    $region11: #{tpu_custom_call.1} parent=1 // pred_check_branch
      %17 = sbr.rel (%p15) target = $region13
    $region12: #{tpu_custom_call.1} parent=1 // pred_region
      %vm18 = vcmask 57344
      %19 = vst.msk [vmem:[#allocation2] sm:$0x1] %vm18, 0.0
      %20 = vst.msk [vmem:[#allocation2 + $0x1] sm:$0x1] %vm18, 0.0
      %v21 = vld [vmem:[%s1] sm:$0xff]
      %v22 = vld [vmem:[%s1 + $0x8] sm:$0xff]
      %24 = vset.pattern.permute.xlu0 0
      %25 = vperm.xlu0 %24, %v21
      %v26 = vpop.permute.xlu0 %25
      %29 = vset.pattern.permute.xlu0 0
      %30 = vperm.xlu0 %29, %v22
      %v31 = vpop.permute.xlu0 %30
      %v35 = vlaneseq
      %v36 = vshrl.u32 %v35, 7
      %v37 = vsub.s32 0, %v36
      %v38 = vrot.slane %v12, %v37
      %v39 = vlaneseq
      %v40 = vshrl.u32 %v39, 7
      %v41 = vsub.s32 0, %v40
      %v42 = vrot.slane %v13, %v41
      %v45 = vsub.f32 %v26, %v38
      %v46 = vsub.f32 %v31, %v42
      %v47 = vand.u32 2147483647, %v45
      %v48 = vand.u32 2147483647, %v46
      %v49 = vld [vmem:[#allocation2] sm:$0x1]
      %v50 = vld [vmem:[#allocation2 + $0x1] sm:$0x1]
      %vm51 = vcmask 64512
      %v52 = vsel %vm51, %v47, 0.0
      %v53 = vrot.slane %v52, 4
      %v54 = vadd.f32 %v52, %v53
      %v55 = vrot.slane %v54, 2
      %v56 = vadd.f32 %v54, %v55
      %v57 = vrot.slane %v56, 1
      %v58 = vadd.f32 %v56, %v57
      %v59 = vsel %vm51, %v48, 0.0
      %v60 = vrot.slane %v59, 4
      %v61 = vadd.f32 %v59, %v60
      %v62 = vrot.slane %v61, 2
      %v63 = vadd.f32 %v61, %v62
      %v64 = vrot.slane %v63, 1
      %v65 = vadd.f32 %v63, %v64
      %v66 = vadd.f32 %v49, %v58
      %v67 = vadd.f32 %v50, %v65
      %68 = vst.msk [vmem:[#allocation2] sm:$0x1] %vm18, %v66
      %69 = vst.msk [vmem:[#allocation2 + $0x1] sm:$0x1] %vm18, %v67
      %v70 = vld [vmem:[#allocation2] sm:$0x1]
      %v71 = vld [vmem:[#allocation2 + $0x1] sm:$0x1]
      %72 = vst.msk [vmem:[#allocation2] sm:$0x1] %vm18, %v70
      %73 = vst.msk [vmem:[#allocation2 + $0x1] sm:$0x1] %vm18, %v71
    $region13: #{tpu_custom_call.1} parent=1 // pred_fallthru
      _
    %v74 = vlaneseq
    %v75 = vshrl.u32 %v74, 7
    %s76 = smul.u32 0, 8
    %v77 = vstv %s76
    %v78 = vadd.s32 %v75, %v77
    %v79 = vmul.u32 %v78, 2
    %v80 = vsub.s32 7, %v79
    %v81 = vcvt.s32.f32 %v80
    %v84 = vlaneseq
    %v85 = vshrl.u32 %v84, 7
    %v86 = vsub.s32 0, %v85
    %v87 = vrot.slane %v12, %v86
    %v88 = vlaneseq
    %v89 = vshrl.u32 %v88, 7
    %v90 = vsub.s32 0, %v89
    %v91 = vrot.slane %v13, %v90
    %v94 = vmul.f32 %v81, %v87
    %v95 = vmul.f32 %v81, %v91
    %v96 = vld [vmem:[#allocation2] sm:$0x1]
    %v97 = vld [vmem:[#allocation2 + $0x1] sm:$0x1]
    %v100 = vlaneseq
    %v101 = vshrl.u32 %v100, 7
    %v102 = vsub.s32 0, %v101
    %v103 = vrot.slane %v96, %v102
    %v104 = vlaneseq
    %v105 = vshrl.u32 %v104, 7
    %v106 = vsub.s32 0, %v105
    %v107 = vrot.slane %v97, %v106
    %v110 = vsub.f32 %v94, %v103
    %v111 = vsub.f32 %v95, %v107
    %vm112 = vcmask 64512
    %v113 = vsel %vm112, %v110, -inf
    %114 = vmax.xlane.f32.xlu0 %v113
    %v115 = vpop.xlane.xlu0 %114
    %v116 = vsel %vm112, %v111, -inf
    %117 = vmax.xlane.f32.xlu0 %v116
    %v118 = vpop.xlane.xlu0 %117
    %v119 = vsub.f32 %v110, %v115
    %v120 = vsub.f32 %v111, %v118
    %v121 = vmul.f32 %v119, 1.442695
    %v122 = vpow.pop %v121
    %v123 = vmul.f32 %v120, 1.442695
    %v124 = vpow.pop %v123
    %125 = vst.msk [vmem:[#allocation3] sm:$0xff] %vm112, %v122
    %126 = vst.msk [vmem:[#allocation3 + $0x8] sm:$0xff] %vm112, %v124
    %v127 = vld [vmem:[#allocation3] sm:$0xff]
    %v128 = vld [vmem:[#allocation3 + $0x8] sm:$0xff]
    %v129 = vsel %vm112, %v127, 0.0
    %130 = vadd.xlane.f32.xlu0 %v129
    %v131 = vpop.xlane.xlu0 %130
    %v132 = vsel %vm112, %v128, 0.0
    %133 = vadd.xlane.f32.xlu0 %v132
    %v134 = vpop.xlane.xlu0 %133
    %v135 = vrcp.pop %v131
    %v136 = vrcp.pop %v134
    %v137 = vmul.f32 %v131, %v135
    %v138 = vmul.f32 %v134, %v136
    %v139 = vsub.f32 2.0, %v137
    %v140 = vsub.f32 2.0, %v138
    %v141 = vmul.f32 %v135, %v139
    %v142 = vmul.f32 %v136, %v140
    %v143 = vmul.f32 %v127, %v141
    %v144 = vmul.f32 %v128, %v142
    %145 = vst.msk [vmem:[#allocation3] sm:$0xff] %vm112, %v143
    %146 = vst.msk [vmem:[#allocation3 + $0x8] sm:$0xff] %vm112, %v144
    // Predicated region
    $region14: #{tpu_custom_call.1} parent=1 // pred_check
      _
    $region15: #{tpu_custom_call.1} parent=1 // pred_check_branch
      %148 = sbr.rel (0) target = $region17
    $region16: #{tpu_custom_call.1} parent=1 // pred_region
      %s150 = ssub.s32 256, 256
      %151 = vsyncadd [#allocation4], %s150
      %s152 = sshll.u32 [#allocation3], 4
      %s153 = int_to_ptr.vmem [resolvable:$true] %s152
      %158 = dma.vmem_to_hbm [thread:$0]  %s153, 256, %s2, [#allocation4], 128, 128, 8
    $region17: #{tpu_custom_call.1} parent=1 // pred_fallthru
      _
    // Predicated region
    $region18: #{tpu_custom_call.1} parent=1 // pred_check
      _
    $region19: #{tpu_custom_call.1} parent=1 // pred_check_branch
      %160 = sbr.rel (0) target = $region21
    $region20: #{tpu_custom_call.1} parent=1 // pred_region
      %161 = dma.done [#allocation4], 256
    $region21: #{tpu_custom_call.1} parent=1 // pred_fallthru
      _
    %162 = vsyncpa [#allocation4], 1

</llo_original>
